<compile_context>
chip_gen: v6e
topology: v6e:2x2x1
jax: 0.10.0
libtpu: 0.0.40
codegen_flags: <defaults>
</compile_context>

<pallas_src>
import jax
import jax.numpy as jnp
from jax.experimental import pallas as pl
from jax.experimental.pallas import tpu as pltpu


def _round_up(n, m):
    return ((n + m - 1) // m) * m


def _ffn_kernel(x_ref, w1t_ref, b1_ref, w2t_ref, b2_ref, o_ref):
    # x_ref: (tm, H) row tile (f32 or bf16); w*t_ref: (H, H) bf16 (transposed);
    # b*_ref: (1, H) f32.
    x = x_ref[...]
    x_res = x.astype(jnp.float32)                    # residual kept in f32
    xc = x.astype(w1t_ref.dtype)                     # bf16 operand for the MXU
    h = jnp.dot(xc, w1t_ref[...], preferred_element_type=jnp.float32)
    h = jnp.maximum(h + b1_ref[...], 0.0)            # bias + ReLU in f32
    y = jnp.dot(h.astype(w2t_ref.dtype), w2t_ref[...],
                preferred_element_type=jnp.float32)
    o_ref[...] = (y + b2_ref[...] + x_res).astype(o_ref.dtype)


def prepare_ffn_params(w1, b1, w2, b2, *, compute_dtype=jnp.bfloat16):
    """One-time (parameter-load-time) prep: transpose the Conv1d weights so the
    kernel computes x @ W^T and cast to the MXU compute dtype; biases stay f32
    as (1, H) rows.  w1/w2: (H, H) (Conv1d kernel dim squeezed); b1/b2: (H,)."""
    w1t = jnp.transpose(w1).astype(compute_dtype)
    w2t = jnp.transpose(w2).astype(compute_dtype)
    b1r = jnp.reshape(b1, (1, -1)).astype(jnp.float32)
    b2r = jnp.reshape(b2, (1, -1)).astype(jnp.float32)
    return w1t, b1r, w2t, b2r


def _vmem_budget_bytes():
    # Per-generation VMEM capacity with headroom for Mosaic internal scratch:
    # ~54 MiB/TC on v7x (64 MiB physical), ~108 MiB on v5e/v6e (128 MiB).
    try:
        cap = int(pltpu.get_tpu_info().vmem_capacity_bytes)
    except Exception:
        cap = 64 * 1024 * 1024
    return int(cap * 0.85)


def _choose_tm(M, H, x_itemsize, resident_bytes, vmem_budget):
    """Row-tile size: as large as VMEM allows (amortizes per-step overhead)."""
    # Per-row VMEM: double-buffered in/out row tiles + ~3 f32-ish temporaries
    # (bf16 x cast, h, y) inside the body; weights/biases are resident.
    per_row = 2 * 2 * H * x_itemsize + 3 * H * 4
    avail = max(vmem_budget - resident_bytes, 4 * 1024 * 1024)
    cap = max(8, (avail // per_row) // 8 * 8)

    Mr = _round_up(max(M, 1), 8)
    if Mr <= min(1024, cap):
        # Small workloads: one large step beats splitting into tiny tiles
        # (per-step overhead dominates; splitting only helps multi-TC parts
        # and there the total work is tiny anyway).
        return Mr
    for cand in (2048, 1024, 512, 256, 128):
        if cand <= cap and M >= 2 * cand:
            return cand
    return max(8, min(128, cap))


def pointwise_feed_forward(x, w1t, b1r, w2t, b2r, *, tm=None):
    """x: (B, L, H), f32 or bf16.  w1t/b1r/w2t/b2r: prepare_ffn_params outputs.
    Returns (B, L, H) with the dtype of x."""
    B, L, H = x.shape
    M = B * L
    x2d = x.reshape(M, H)                            # free; no HBM pad/slice passes

    x_itemsize = jnp.dtype(x.dtype).itemsize
    w_itemsize = jnp.dtype(w1t.dtype).itemsize
    w_bytes = 2 * H * H * w_itemsize
    b_bytes = 2 * H * 4
    resident_bytes = w_bytes + b_bytes

    vmem_budget = _vmem_budget_bytes()
    if tm is None:
        tm = _choose_tm(M, H, x_itemsize, resident_bytes, vmem_budget)
    grid = (pl.cdiv(M, tm),)

    cost = pl.CostEstimate(
        flops=4 * M * H * H,                          # two M x H x H matmuls
        transcendentals=0,
        bytes_accessed=2 * M * H * x_itemsize + resident_bytes,
    )

    # Double-buffered (tm, H) in/out tiles + f32 body temporaries + resident
    # (single-buffered) weights and biases; leave 2x slack under the budget.
    vmem_need = 2 * 2 * tm * H * x_itemsize + 3 * tm * H * 4 + resident_bytes
    vmem_limit = int(min(max(2 * vmem_need, 32 * 1024 * 1024), vmem_budget))

    out = pl.pallas_call(
        _ffn_kernel,
        out_shape=jax.ShapeDtypeStruct((M, H), x.dtype),
        grid_spec=pltpu.PrefetchScalarGridSpec(
            num_scalar_prefetch=0,
            grid=grid,
            in_specs=[
                # x row tile; last block may be ragged (OOB stores are masked).
                pl.BlockSpec((tm, H), lambda i: (i, 0)),
                # Resident weights/biases: constant index_map, single-buffered.
                pl.BlockSpec((H, H), lambda i: (0, 0), pipeline_mode=pl.Buffered(1)),
                pl.BlockSpec((1, H), lambda i: (0, 0), pipeline_mode=pl.Buffered(1)),
                pl.BlockSpec((H, H), lambda i: (0, 0), pipeline_mode=pl.Buffered(1)),
                pl.BlockSpec((1, H), lambda i: (0, 0), pipeline_mode=pl.Buffered(1)),
            ],
            out_specs=pl.BlockSpec((tm, H), lambda i: (i, 0)),
        ),
        compiler_params=pltpu.CompilerParams(
            dimension_semantics=("parallel",),
            vmem_limit_bytes=vmem_limit,
        ),
        input_output_aliases={0: 0},                  # donate x slab to the output
        cost_estimate=cost,
    )(x2d, w1t, b1r, w2t, b2r)

    return out.reshape(B, L, H)


def _reference(x, w1, b1, w2, b2):
    h = jnp.maximum(jnp.einsum("blh,oh->blo", x, w1) + b1, 0.0)
    y = jnp.einsum("blh,oh->blo", h, w2) + b2
    return y + x


if __name__ == "__main__":
    B, L, H = 2, 8, 32   # batch, seq len, hidden_units

    key = jax.random.PRNGKey(0)
    kx, k1, k2, k3, k4 = jax.random.split(key, 5)

    x = jax.random.normal(kx, (B, L, H), dtype=jnp.float32)
    # Conv1d(H, H, kernel_size=1) weight is (H, H, 1) in PyTorch -> squeeze last dim.
    w1 = jax.random.normal(k1, (H, H), dtype=jnp.float32) * 0.05
    b1 = jax.random.normal(k2, (H,), dtype=jnp.float32) * 0.05
    w2 = jax.random.normal(k3, (H, H), dtype=jnp.float32) * 0.05
    b2 = jax.random.normal(k4, (H,), dtype=jnp.float32) * 0.05

    params = prepare_ffn_params(w1, b1, w2, b2)   # once, at parameter-load time
    out = pointwise_feed_forward(x, *params)
    out = jax.block_until_ready(out)

    ref = _reference(x, w1, b1, w2, b2)
    assert out.shape == (B, L, H)
    # bf16 MXU inputs with f32 accumulation -> small drift vs the pure-f32 reference.
    assert jnp.allclose(out, ref, atol=3e-2, rtol=3e-2), "mismatch vs reference"

    print("KERNEL_OK")
</pallas_src>

<mosaic_0001>
module attributes {stable_mosaic.version = 11 : i64} {
  func.func @_ffn_kernel(%arg0: i32, %arg1: memref<16x32xf32, #tpu.memory_space<vmem>>, %arg2: memref<32x32xbf16, #tpu.memory_space<vmem>>, %arg3: memref<1x32xf32, #tpu.memory_space<vmem>>, %arg4: memref<32x32xbf16, #tpu.memory_space<vmem>>, %arg5: memref<1x32xf32, #tpu.memory_space<vmem>>, %arg6: memref<16x32xf32, #tpu.memory_space<vmem>>) attributes {dimension_semantics = [#tpu.dimension_semantics<parallel>], iteration_bounds = array<i64: 1>, scalar_prefetch = 0 : i64, scratch_operands = 0 : i64, tpu.core_type = #tpu.core_type<tc>, window_params = [{transform_indices = @transform_0, window_bounds = array<i64: 16, 32>}, {pipeline_mode = #tpu.pipeline_mode<synchronous>, transform_indices = @transform_1, window_bounds = array<i64: 32, 32>}, {pipeline_mode = #tpu.pipeline_mode<synchronous>, transform_indices = @transform_2, window_bounds = array<i64: 1, 32>}, {pipeline_mode = #tpu.pipeline_mode<synchronous>, transform_indices = @transform_3, window_bounds = array<i64: 32, 32>}, {pipeline_mode = #tpu.pipeline_mode<synchronous>, transform_indices = @transform_4, window_bounds = array<i64: 1, 32>}, {transform_indices = @transform_5, window_bounds = array<i64: 16, 32>}]} {
    %c0 = arith.constant 0 : index
    %c0_0 = arith.constant 0 : index
    %0 = vector.load %arg1[%c0, %c0_0] : memref<16x32xf32, #tpu.memory_space<vmem>>, vector<16x32xf32>
    %1 = arith.truncf %0 : vector<16x32xf32> to vector<16x32xbf16>
    %c0_1 = arith.constant 0 : index
    %c0_2 = arith.constant 0 : index
    %2 = vector.load %arg2[%c0_1, %c0_2] : memref<32x32xbf16, #tpu.memory_space<vmem>>, vector<32x32xbf16>
    %cst = arith.constant dense<0.000000e+00> : vector<16x32xf32>
    %3 = tpu.matmul %1, %2, %cst {dimension_numbers = #tpu.dot_dimension_numbers<[1], [0], [0], [1], [0, 0, 1, 1], [], []>} : vector<16x32xbf16>, vector<32x32xbf16>, vector<16x32xf32> -> vector<16x32xf32>
    %c0_3 = arith.constant 0 : index
    %c0_4 = arith.constant 0 : index
    %4 = vector.load %arg3[%c0_3, %c0_4] : memref<1x32xf32, #tpu.memory_space<vmem>>, vector<1x32xf32>
    %5 = vector.broadcast %4 : vector<1x32xf32> to vector<16x32xf32>
    %6 = arith.addf %3, %5 : vector<16x32xf32>
    %cst_5 = arith.constant 0.000000e+00 : f32
    %7 = vector.broadcast %cst_5 : f32 to vector<16x32xf32>
    %8 = arith.maximumf %6, %7 : vector<16x32xf32>
    %9 = arith.truncf %8 : vector<16x32xf32> to vector<16x32xbf16>
    %c0_6 = arith.constant 0 : index
    %c0_7 = arith.constant 0 : index
    %10 = vector.load %arg4[%c0_6, %c0_7] : memref<32x32xbf16, #tpu.memory_space<vmem>>, vector<32x32xbf16>
    %cst_8 = arith.constant dense<0.000000e+00> : vector<16x32xf32>
    %11 = tpu.matmul %9, %10, %cst_8 {dimension_numbers = #tpu.dot_dimension_numbers<[1], [0], [0], [1], [0, 0, 1, 1], [], []>} : vector<16x32xbf16>, vector<32x32xbf16>, vector<16x32xf32> -> vector<16x32xf32>
    %c0_9 = arith.constant 0 : index
    %c0_10 = arith.constant 0 : index
    %12 = vector.load %arg5[%c0_9, %c0_10] : memref<1x32xf32, #tpu.memory_space<vmem>>, vector<1x32xf32>
    %13 = vector.broadcast %12 : vector<1x32xf32> to vector<16x32xf32>
    %14 = arith.addf %11, %13 : vector<16x32xf32>
    %15 = arith.addf %14, %0 : vector<16x32xf32>
    %c0_11 = arith.constant 0 : index
    %c0_12 = arith.constant 0 : index
    %16 = vector.load %arg6[%c0_11, %c0_12] : memref<16x32xf32, #tpu.memory_space<vmem>>, vector<16x32xf32>
    tpu.vector_store %arg6[%c0_11, %c0_12], %15 {strides = array<i32>} : memref<16x32xf32, #tpu.memory_space<vmem>>, vector<16x32xf32>,
    return
  }
  func.func @transform_0(%arg0: i32) -> (i32, i32) {
    %c0_i32 = arith.constant 0 : i32
    %c0_i32_0 = arith.constant 0 : i32
    return %arg0, %c0_i32 : i32, i32
  }
  func.func @transform_1(%arg0: i32) -> (i32, i32) {
    %c0_i32 = arith.constant 0 : i32
    %c0_i32_0 = arith.constant 0 : i32
    %c0_i32_1 = arith.constant 0 : i32
    return %c0_i32, %c0_i32_0 : i32, i32
  }
  func.func @transform_2(%arg0: i32) -> (i32, i32) {
    %c0_i32 = arith.constant 0 : i32
    %c0_i32_0 = arith.constant 0 : i32
    %c0_i32_1 = arith.constant 0 : i32
    return %c0_i32, %c0_i32_0 : i32, i32
  }
  func.func @transform_3(%arg0: i32) -> (i32, i32) {
    %c0_i32 = arith.constant 0 : i32
    %c0_i32_0 = arith.constant 0 : i32
    %c0_i32_1 = arith.constant 0 : i32
    return %c0_i32, %c0_i32_0 : i32, i32
  }
  func.func @transform_4(%arg0: i32) -> (i32, i32) {
    %c0_i32 = arith.constant 0 : i32
    %c0_i32_0 = arith.constant 0 : i32
    %c0_i32_1 = arith.constant 0 : i32
    return %c0_i32, %c0_i32_0 : i32, i32
  }
  func.func @transform_5(%arg0: i32) -> (i32, i32) {
    %c0_i32 = arith.constant 0 : i32
    %c0_i32_0 = arith.constant 0 : i32
    return %arg0, %c0_i32 : i32, i32
  }
}

</mosaic_0001>

<llo_original>
// kernel: tpu_custom_call.1
$region0: #{tpu_custom_call.1}
  #allocation0 [shape = 'u32[]', space=smem, size = 0x4, offset = 0x4, fixed_abs, tag = 'smem constant byte address 0x4 - core index']
  #allocation1 [shape = 'u32[144,128]{1,0:T(1,128)}', space=vmem, size = 0x12000, scoped, tag = 'internal scratch']
  %s0 = inlined_call_operand.hbm [shape: f32[16,32], index: 0, kind: input, shape index: {}, may-alias: {0,5}]
  %s1 = inlined_call_operand.vmem [shape: bf16[32,32], index: 1, kind: input, shape index: {}]
  %s2 = inlined_call_operand.vmem [shape: f32[1,32], index: 2, kind: input, shape index: {}]
  %s3 = inlined_call_operand.vmem [shape: bf16[32,32], index: 3, kind: input, shape index: {}]
  %s4 = inlined_call_operand.vmem [shape: f32[1,32], index: 4, kind: input, shape index: {}]
  %s5 = inlined_call_operand.hbm [shape: f32[16,32], index: 5, kind: output, shape index: {}, may-alias: {0,5}]
  %s6 = sld [smem:[#allocation0]]
  $region34: #{tpu_custom_call.1} parent=0
    _
  %s8 = ssub.s32 1, %s6
  %s9 = scalar_select 0, %s8, %s6
  $region1: #{tpu_custom_call.1} parent=0
    #allocation2 [shape = 'u8[8192]{0}', space=vmem, size = 0x2000, scoped, tag = 'input window, operand 0, single buffered']
    #allocation3 [shape = 's32[1]{0}', space=sflag, size = 0x4, scoped, tag = 'scoped memory for tpu_custom_call.1']
    #allocation4 [shape = 's32[1]{0}', space=sflag, size = 0x4, scoped, tag = 'scoped memory for tpu_custom_call.1']
    #allocation5 [shape = 'u8[8192]{0}', space=vmem, size = 0x2000, scoped, tag = 'output window, operand 0, single buffered']
    %10 = vsyncpa [#allocation3], 0
    %11 = vsyncpa [#allocation4], 0
    // Predicated region
    $region2: #{tpu_custom_call.1} parent=1 // pred_check
      _
    $region3: #{tpu_custom_call.1} parent=1 // pred_check_branch
      %13 = sbr.rel (0) target = $region5
    $region4: #{tpu_custom_call.1} parent=1 // pred_region
      %s15 = ssub.s32 256, 256
      %16 = vsyncadd [#allocation3], %s15
      %s17 = sshll.u32 [#allocation2], 4
      %s18 = int_to_ptr.vmem [resolvable:$true] %s17
      %23 = dma.hbm_to_vmem [thread:$0]  %s0, 256, %s18, [#allocation3], 128, 128, 8
    $region5: #{tpu_custom_call.1} parent=1 // pred_fallthru
      _
    // Predicated region
    $region6: #{tpu_custom_call.1} parent=1 // pred_check
      _
    $region7: #{tpu_custom_call.1} parent=1 // pred_check_branch
      %25 = sbr.rel (0) target = $region9
    $region8: #{tpu_custom_call.1} parent=1 // pred_region
      _
    $region9: #{tpu_custom_call.1} parent=1 // pred_fallthru
      _
    // Predicated region
    $region10: #{tpu_custom_call.1} parent=1 // pred_check
      _
    $region11: #{tpu_custom_call.1} parent=1 // pred_check_branch
      %27 = sbr.rel (0) target = $region13
    $region12: #{tpu_custom_call.1} parent=1 // pred_region
      _
    $region13: #{tpu_custom_call.1} parent=1 // pred_fallthru
      _
    // Predicated region
    $region14: #{tpu_custom_call.1} parent=1 // pred_check
      _
    $region15: #{tpu_custom_call.1} parent=1 // pred_check_branch
      %29 = sbr.rel (0) target = $region17
    $region16: #{tpu_custom_call.1} parent=1 // pred_region
      _
    $region17: #{tpu_custom_call.1} parent=1 // pred_fallthru
      _
    // Predicated region
    $region18: #{tpu_custom_call.1} parent=1 // pred_check
      _
    $region19: #{tpu_custom_call.1} parent=1 // pred_check_branch
      %31 = sbr.rel (0) target = $region21
    $region20: #{tpu_custom_call.1} parent=1 // pred_region
      _
    $region21: #{tpu_custom_call.1} parent=1 // pred_fallthru
      _
    // Predicated region
    $region22: #{tpu_custom_call.1} parent=1 // pred_check
      _
    $region23: #{tpu_custom_call.1} parent=1 // pred_check_branch
      %33 = sbr.rel (0) target = $region25
    $region24: #{tpu_custom_call.1} parent=1 // pred_region
      %34 = dma.done [#allocation3], 256
    $region25: #{tpu_custom_call.1} parent=1 // pred_fallthru
      _
    %v36 = vld [vmem:[#allocation2] sm:$0xff]
    %v37 = vld [vmem:[#allocation2 + $0x8] sm:$0xff]
    %v38 = vpack.c.bf16 %v37, %v36
    %v39 = vld [vmem:[%s1] sm:$0xf]
    %v40 = vld [vmem:[%s1 + $0x4] sm:$0xf]
    %v41 = vld [vmem:[%s1 + $0x8] sm:$0xf]
    %v42 = vld [vmem:[%s1 + $0xc] sm:$0xf]
    %v43 = vld [vmem:[%s2] sm:$0x1]
    %v45 = vlaneseq
    %v46 = vshrl.u32 %v45, 7
    %v47 = vsub.s32 0, %v46
    %v48 = vrot.slane %v43, %v47
    %v54 = vunpack.c.l.b16 %v39
    %v55 = vunpack.c.l.b16 %v40
    %v56 = vunpack.c.l.b16 %v41
    %v57 = vunpack.c.l.b16 %v42
    %v58 = vpack.c.b16 %v55, %v54
    %v59 = vpack.c.b16 %v57, %v56
    %vm62 = vcmask 261120
    %v64 = vsel %vm62, %v38, 0
    %66 = vmatprep.subr.bf16.mxu0 0
    %67 = vmatpush1.bf16.msra.mxu0 0
    %68 = vmatprep.subr.bf16.mxu0 0
    %69 = vmatpush1.bf16.msra.mxu0 0
    %70 = vmatprep.subr.bf16.mxu0 0
    %71 = vmatpush1.bf16.msra.mxu0 0
    %72 = vmatprep.subr.bf16.mxu0 0
    %73 = vmatpush1.bf16.msra.mxu0 0
    %74 = vmatprep.subr.bf16.mxu0 0
    %75 = vmatpush1.bf16.msra.mxu0 0
    %76 = vmatprep.subr.bf16.mxu0 0
    %77 = vmatpush1.bf16.msra.mxu0 0
    %78 = vmatprep.subr.bf16.mxu0 0
    %79 = vmatpush1.bf16.msra.mxu0 %v59
    %80 = vmatprep.subr.bf16.mxu0 0
    %81 = vmatpush1.bf16.msra.mxu0 %v58
    %82 = vmatprep.subr.bf16.mxu0 0
    %83 = vmatpush2.bf16.msra.mxu0 0
    %84 = vmatprep.subr.bf16.mxu0 0
    %85 = vmatpush2.bf16.msra.mxu0 0
    %86 = vmatprep.subr.bf16.mxu0 0
    %87 = vmatpush2.bf16.msra.mxu0 0
    %88 = vmatprep.subr.bf16.mxu0 0
    %89 = vmatpush2.bf16.msra.mxu0 0
    %90 = vmatprep.subr.bf16.mxu0 0
    %91 = vmatpush2.bf16.msra.mxu0 0
    %92 = vmatprep.subr.bf16.mxu0 0
    %93 = vmatpush2.bf16.msra.mxu0 0
    %94 = vmatprep.subr.bf16.mxu0 0
    %95 = vmatpush2.bf16.msra.mxu0 0
    %96 = vmatprep.subr.bf16.mxu0 0
    %97 = vmatpush2.bf16.msra.mxu0 0
    %98 = vmatprep.mubr.bf16.mxu0 0
    %99 = vmatmul.mubr.bf16.gmra.mxu0 %v64
    %v100 = vpop.f32.mrf.mxu0
    %v101 = vadd.f32 %v48, %v100
    %v102 = vpop.f32.mrf.mxu0
    %v103 = vpop.f32.mrf.mxu0
    %v104 = vadd.f32 %v48, %v103
    %v105 = vpop.f32.mrf.mxu0
    %106 = vdwg.mxu0
    %v107 = vmax.f32 %v101, 0.0
    %v108 = vmax.f32 %v104, 0.0
    %v109 = vpack.c.bf16 %v108, %v107
    %v110 = vld [vmem:[%s3] sm:$0xf]
    %v111 = vld [vmem:[%s3 + $0x4] sm:$0xf]
    %v112 = vld [vmem:[%s3 + $0x8] sm:$0xf]
    %v113 = vld [vmem:[%s3 + $0xc] sm:$0xf]
    %v114 = vld [vmem:[%s4] sm:$0x1]
    %v116 = vlaneseq
    %v117 = vshrl.u32 %v116, 7
    %v118 = vsub.s32 0, %v117
    %v119 = vrot.slane %v114, %v118
    %v125 = vunpack.c.l.b16 %v110
    %v126 = vunpack.c.l.b16 %v111
    %v127 = vunpack.c.l.b16 %v112
    %v128 = vunpack.c.l.b16 %v113
    %v129 = vpack.c.b16 %v126, %v125
    %v130 = vpack.c.b16 %v128, %v127
    %v134 = vsel %vm62, %v109, 0
    %136 = vmatprep.subr.bf16.mxu0 0
    %137 = vmatpush1.bf16.msra.mxu0 0
    %138 = vmatprep.subr.bf16.mxu0 0
    %139 = vmatpush1.bf16.msra.mxu0 0
    %140 = vmatprep.subr.bf16.mxu0 0
    %141 = vmatpush1.bf16.msra.mxu0 0
    %142 = vmatprep.subr.bf16.mxu0 0
    %143 = vmatpush1.bf16.msra.mxu0 0
    %144 = vmatprep.subr.bf16.mxu0 0
    %145 = vmatpush1.bf16.msra.mxu0 0
    %146 = vmatprep.subr.bf16.mxu0 0
    %147 = vmatpush1.bf16.msra.mxu0 0
    %148 = vmatprep.subr.bf16.mxu0 0
    %149 = vmatpush1.bf16.msra.mxu0 %v130
    %150 = vmatprep.subr.bf16.mxu0 0
    %151 = vmatpush1.bf16.msra.mxu0 %v129
    %152 = vmatprep.subr.bf16.mxu0 0
    %153 = vmatpush2.bf16.msra.mxu0 0
    %154 = vmatprep.subr.bf16.mxu0 0
    %155 = vmatpush2.bf16.msra.mxu0 0
    %156 = vmatprep.subr.bf16.mxu0 0
    %157 = vmatpush2.bf16.msra.mxu0 0
    %158 = vmatprep.subr.bf16.mxu0 0
    %159 = vmatpush2.bf16.msra.mxu0 0
    %160 = vmatprep.subr.bf16.mxu0 0
    %161 = vmatpush2.bf16.msra.mxu0 0
    %162 = vmatprep.subr.bf16.mxu0 0
    %163 = vmatpush2.bf16.msra.mxu0 0
    %164 = vmatprep.subr.bf16.mxu0 0
    %165 = vmatpush2.bf16.msra.mxu0 0
    %166 = vmatprep.subr.bf16.mxu0 0
    %167 = vmatpush2.bf16.msra.mxu0 0
    %168 = vmatprep.mubr.bf16.mxu0 0
    %169 = vmatmul.mubr.bf16.gmra.mxu0 %v134
    %v170 = vpop.f32.mrf.mxu0
    %v171 = vadd.f32 %v119, %v170
    %v172 = vpop.f32.mrf.mxu0
    %v173 = vpop.f32.mrf.mxu0
    %v174 = vadd.f32 %v119, %v173
    %v175 = vpop.f32.mrf.mxu0
    %176 = vdwg.mxu0
    %v177 = vadd.f32 %v171, %v36
    %v178 = vadd.f32 %v174, %v37
    %179 = vst.msk [vmem:[#allocation5] sm:$0xff] %vm62, %v177
    %180 = vst.msk [vmem:[#allocation5 + $0x8] sm:$0xff] %vm62, %v178
    // Predicated region
    $region26: #{tpu_custom_call.1} parent=1 // pred_check
      _
    $region27: #{tpu_custom_call.1} parent=1 // pred_check_branch
      %182 = sbr.rel (0) target = $region29
    $region28: #{tpu_custom_call.1} parent=1 // pred_region
      %s184 = ssub.s32 256, 256
      %185 = vsyncadd [#allocation4], %s184
      %s186 = sshll.u32 [#allocation5], 4
      %s187 = int_to_ptr.vmem [resolvable:$true] %s186
      %192 = dma.vmem_to_hbm [thread:$0]  %s187, 256, %s5, [#allocation4], 128, 128, 8
    $region29: #{tpu_custom_call.1} parent=1 // pred_fallthru
      _
    // Predicated region
    $region30: #{tpu_custom_call.1} parent=1 // pred_check
      _
    $region31: #{tpu_custom_call.1} parent=1 // pred_check_branch
      %194 = sbr.rel (0) target = $region33
    $region32: #{tpu_custom_call.1} parent=1 // pred_region
      %195 = dma.done [#allocation4], 256
    $region33: #{tpu_custom_call.1} parent=1 // pred_fallthru
      _
    %196 = vsyncpa [#allocation3], 1
    %197 = vsyncpa [#allocation4], 1

</llo_original>
